<compile_context>
chip_gen: v7x
topology: tpu7x:2x2x1
jax: 0.10.0
libtpu: 0.0.40
codegen_flags: <defaults>
</compile_context>

<pallas_src>
import jax
import jax.numpy as jnp
from jax import lax
from jax.experimental import pallas as pl
from jax.experimental.pallas import tpu as pltpu

TP_MAX = 131072    # max pixels per grid step (~4.6 MiB VMEM double-buffered)
TP_GRANULE = 2048  # pixels; sublane rows multiple of 16 (bf16) / 8 (f32)


def _round_up(x, m):
    return ((x + m - 1) // m) * m


def phong_normal_kernel(attrs_ref, out_ref):
    """L2-normalize pre-summed per-pixel face normals.

    attrs_ref: (3, tpr, 128) bf16 -- channel-major gathered per-face normal
               sums (background/padded pixels gathered the all-zero row).
    out_ref  : (3, tpr, 128) f32  -- normalized pixel normals (NaN for
               background, matching the PyTorch 0/0 reference).
    """
    x = attrs_ref[...].astype(jnp.float32)   # explicit upcast: v5e has no bf16 VPU
    nx, ny, nz = x[0], x[1], x[2]
    # rsqrt lowers to the EUP (its own VLIW slot); 0 * inf = NaN preserves the
    # reference 0/0 semantics for background pixels.
    inv = lax.rsqrt(nx * nx + ny * ny + nz * nz)
    out_ref[0] = nx * inv
    out_ref[1] = ny * inv
    out_ref[2] = nz * inv


def phong_normal_normalized(pix_to_face, faces, vertex_normals):
    """phong_normal_shading (bary = ones) + L2 normalization, hot path in Pallas."""
    N, H, W, K = pix_to_face.shape
    P = N * H * W * K
    F = faces.shape[0]

    # interpolate_face_attributes with ones as bary weights == plain sum of the
    # three face-vertex normals: pre-sum once in the tiny per-face table so the
    # per-pixel gathered stream is 3 channels, not 9.  Append a zero row
    # (index F) so background / padded pixels gather zeros.  bf16 halves the
    # dominant gathered stream; the kernel re-normalizes in f32.
    face_normal_sum = vertex_normals[faces].sum(axis=1)              # (F, 3)
    fn_t = jnp.concatenate(
        [face_normal_sum, jnp.zeros((1, 3), face_normal_sum.dtype)], axis=0
    ).T.astype(jnp.bfloat16)                                         # (3, F+1)

    p2f_flat = pix_to_face.reshape(P)
    safe_idx = jnp.where(p2f_flat < 0, F, p2f_flat).astype(jnp.int32)

    # Tile: lane-dense, multiple of 2048 pixels (=> 16-row bf16 / 8-row f32
    # tile-exact blocks); cap so the grid has >= 2 steps for any non-tiny P
    # (both v7x TensorCores used via dimension_semantics=("parallel",)).
    tp = min(TP_MAX, _round_up(-(-P // 2), TP_GRANULE))
    P_pad = _round_up(P, tp)
    if P_pad != P:
        safe_idx = jnp.concatenate(
            [safe_idx, jnp.full((P_pad - P,), F, jnp.int32)])

    # Sublane-exact gather target: (3, P_pad//128, 128) — pixels folded into
    # (sublanes x lanes), channel as a pure major dim, so no 8/16-sublane
    # padding inflates HBM traffic on either side of the kernel.
    M = P_pad // 128
    idx2d = safe_idx.reshape(M, 128)
    attrs = jnp.take(fn_t, idx2d, axis=1)                            # (3, M, 128) bf16

    tpr = tp // 128
    out = pl.pallas_call(
        phong_normal_kernel,
        out_shape=jax.ShapeDtypeStruct((3, M, 128), jnp.float32),
        grid_spec=pltpu.PrefetchScalarGridSpec(
            num_scalar_prefetch=0,
            grid=(M // tpr,),
            in_specs=[pl.BlockSpec((3, tpr, 128), lambda i: (0, i, 0))],
            out_specs=pl.BlockSpec((3, tpr, 128), lambda i: (0, i, 0)),
        ),
        compiler_params=pltpu.CompilerParams(
            dimension_semantics=("parallel",)),
    )(attrs)

    # Module contract is channel-last (N, H, W, K, 3); this transpose is the
    # only remaining relayout pass (a channel-first consumer could skip it).
    return out.reshape(3, P_pad)[:, :P].T.reshape(N, H, W, K, 3)


def compute_vertex_normals(verts, faces):
    """meshes.verts_normals_packed(): accumulate face cross products per vertex."""
    # TODO(synk): scatter-add has no clean Pallas TPU equivalent; done in JAX.
    v0 = verts[faces[:, 0]]
    v1 = verts[faces[:, 1]]
    v2 = verts[faces[:, 2]]
    fn = jnp.cross(v1 - v0, v2 - v0)
    vn = jnp.zeros_like(verts)
    vn = vn.at[faces[:, 0]].add(fn)
    vn = vn.at[faces[:, 1]].add(fn)
    vn = vn.at[faces[:, 2]].add(fn)
    # eps matches torch.nn.functional.normalize(..., eps=1e-6) used by PyTorch3D.
    return vn / jnp.maximum(jnp.linalg.norm(vn, axis=-1, keepdims=True), 1e-6)


def mesh_renderer_with_depth_and_normal(verts, faces, pix_to_face, bary_coords,
                                        zbuf, images, return_only_image=False):
    """Forward pass of MeshRendererWithDepthAndNormal.

    `images` (shader output) and the fragment buffers (rasterizer output) are
    inputs, since rasterizer/shader are externally supplied modules.
    Returns (images, zbuf, v_normalized) like the PyTorch module.
    """
    # TODO(synk): the PyTorch3D rasterizer and shader submodules are external
    # black boxes with no clean Pallas equivalent; their outputs are inputs here.
    if return_only_image:
        return images
    del bary_coords  # phong_normal_shading replaces bary with ones_like(bary)
    vertex_normals = compute_vertex_normals(verts, faces)
    v_normalized = phong_normal_normalized(pix_to_face, faces, vertex_normals)
    return images, zbuf, v_normalized


if __name__ == "__main__":
    key = jax.random.PRNGKey(0)
    kv, kf, kp, kb, kz, ki = jax.random.split(key, 6)

    # Small synthetic mesh + fragments, shapes consistent with the module.
    # W=15 makes P not a multiple of 128, exercising the padded-tail path.
    V, F = 24, 32
    N, H, W, K = 2, 16, 15, 1

    verts = jax.random.normal(kv, (V, 3), dtype=jnp.float32)
    faces = jax.random.randint(kf, (F, 3), 0, V, dtype=jnp.int32)

    pix_to_face = jax.random.randint(kp, (N, H, W, K), -1, F, dtype=jnp.int32)
    bary_raw = jax.random.uniform(kb, (N, H, W, K, 3), dtype=jnp.float32) + 1e-3
    bary_coords = bary_raw / jnp.sum(bary_raw, axis=-1, keepdims=True)
    zbuf = jax.random.uniform(kz, (N, H, W, K), dtype=jnp.float32)
    images = jax.random.uniform(ki, (N, H, W, 4), dtype=jnp.float32)

    out_images, out_zbuf, v_normalized = mesh_renderer_with_depth_and_normal(
        verts, faces, pix_to_face, bary_coords, zbuf, images)
    jax.block_until_ready((out_images, out_zbuf, v_normalized))

    assert out_images.shape == (N, H, W, 4)
    assert out_zbuf.shape == (N, H, W, K)
    assert v_normalized.shape == (N, H, W, K, 3)

    # Pure-JAX f32 reference of the same math.
    vn_ref = compute_vertex_normals(verts, faces)
    face_sum_ref = vn_ref[faces].sum(axis=1)                       # (F, 3)
    safe = jnp.where(pix_to_face < 0, 0, pix_to_face)
    fg = (pix_to_face >= 0)[..., None]
    pn_ref = jnp.where(fg, face_sum_ref[safe], 0.0)
    v_ref = pn_ref / jnp.linalg.norm(pn_ref, axis=-1, keepdims=True)

    # Compare foreground pixels with a non-degenerate normal sum; tolerance
    # accounts for the bf16-streamed normals (re-normalized in f32).
    ok = fg & (jnp.linalg.norm(pn_ref, axis=-1, keepdims=True) > 1e-1)
    diff = jnp.where(ok, v_normalized - v_ref, 0.0)
    assert float(jnp.max(jnp.abs(diff))) < 3e-2

    # Background pixels must be 0/0 = NaN, matching the PyTorch reference.
    assert bool(jnp.all(jnp.isnan(jnp.where(fg, jnp.nan, v_normalized))))

    print("KERNEL_OK")
</pallas_src>

<mosaic_0001>
module attributes {stable_mosaic.version = 11 : i64} {
  func.func @phong_normal_kernel(%arg0: i32, %arg1: memref<3x16x128xbf16, #tpu.memory_space<vmem>>, %arg2: memref<3x16x128xf32, #tpu.memory_space<vmem>>) attributes {dimension_semantics = [#tpu.dimension_semantics<parallel>], iteration_bounds = array<i64: 1>, scalar_prefetch = 0 : i64, scratch_operands = 0 : i64, tpu.core_type = #tpu.core_type<tc>, window_params = [{transform_indices = @transform_0, window_bounds = array<i64: 3, 16, 128>}, {transform_indices = @transform_1, window_bounds = array<i64: 3, 16, 128>}]} {
    %c0 = arith.constant 0 : index
    %c0_0 = arith.constant 0 : index
    %c0_1 = arith.constant 0 : index
    %0 = vector.load %arg1[%c0, %c0_0, %c0_1] : memref<3x16x128xbf16, #tpu.memory_space<vmem>>, vector<3x16x128xbf16>
    %1 = arith.extf %0 : vector<3x16x128xbf16> to vector<3x16x128xf32>
    %2 = vector.extract_strided_slice %1 {offsets = [0, 0, 0], sizes = [1, 16, 128], strides = [1, 1, 1]} : vector<3x16x128xf32> to vector<1x16x128xf32>
    %3 = vector.shape_cast %2 : vector<1x16x128xf32> to vector<16x128xf32>
    %4 = vector.extract_strided_slice %1 {offsets = [1, 0, 0], sizes = [1, 16, 128], strides = [1, 1, 1]} : vector<3x16x128xf32> to vector<1x16x128xf32>
    %5 = vector.shape_cast %4 : vector<1x16x128xf32> to vector<16x128xf32>
    %6 = vector.extract_strided_slice %1 {offsets = [2, 0, 0], sizes = [1, 16, 128], strides = [1, 1, 1]} : vector<3x16x128xf32> to vector<1x16x128xf32>
    %7 = vector.shape_cast %6 : vector<1x16x128xf32> to vector<16x128xf32>
    %8 = arith.mulf %3, %3 : vector<16x128xf32>
    %9 = arith.mulf %5, %5 : vector<16x128xf32>
    %10 = arith.addf %8, %9 : vector<16x128xf32>
    %11 = arith.mulf %7, %7 : vector<16x128xf32>
    %12 = arith.addf %10, %11 : vector<16x128xf32>
    %13 = math.rsqrt %12 : vector<16x128xf32>
    %14 = arith.mulf %3, %13 : vector<16x128xf32>
    %c0_2 = arith.constant 0 : index
    %c0_3 = arith.constant 0 : index
    %c0_4 = arith.constant 0 : index
    %15 = vector.load %arg2[%c0_2, %c0_3, %c0_4] : memref<3x16x128xf32, #tpu.memory_space<vmem>>, vector<1x16x128xf32>
    %16 = vector.shape_cast %15 : vector<1x16x128xf32> to vector<16x128xf32>
    %17 = vector.shape_cast %14 : vector<16x128xf32> to vector<1x16x128xf32>
    tpu.vector_store %arg2[%c0_2, %c0_3, %c0_4], %17 {strides = array<i32>} : memref<3x16x128xf32, #tpu.memory_space<vmem>>, vector<1x16x128xf32>,
    %18 = arith.mulf %5, %13 : vector<16x128xf32>
    %c1 = arith.constant 1 : index
    %c0_5 = arith.constant 0 : index
    %c0_6 = arith.constant 0 : index
    %19 = vector.load %arg2[%c1, %c0_5, %c0_6] : memref<3x16x128xf32, #tpu.memory_space<vmem>>, vector<1x16x128xf32>
    %20 = vector.shape_cast %19 : vector<1x16x128xf32> to vector<16x128xf32>
    %21 = vector.shape_cast %18 : vector<16x128xf32> to vector<1x16x128xf32>
    tpu.vector_store %arg2[%c1, %c0_5, %c0_6], %21 {strides = array<i32>} : memref<3x16x128xf32, #tpu.memory_space<vmem>>, vector<1x16x128xf32>,
    %22 = arith.mulf %7, %13 : vector<16x128xf32>
    %c2 = arith.constant 2 : index
    %c0_7 = arith.constant 0 : index
    %c0_8 = arith.constant 0 : index
    %23 = vector.load %arg2[%c2, %c0_7, %c0_8] : memref<3x16x128xf32, #tpu.memory_space<vmem>>, vector<1x16x128xf32>
    %24 = vector.shape_cast %23 : vector<1x16x128xf32> to vector<16x128xf32>
    %25 = vector.shape_cast %22 : vector<16x128xf32> to vector<1x16x128xf32>
    tpu.vector_store %arg2[%c2, %c0_7, %c0_8], %25 {strides = array<i32>} : memref<3x16x128xf32, #tpu.memory_space<vmem>>, vector<1x16x128xf32>,
    return
  }
  func.func @transform_0(%arg0: i32) -> (i32, i32, i32) {
    %c0_i32 = arith.constant 0 : i32
    %c0_i32_0 = arith.constant 0 : i32
    %c0_i32_1 = arith.constant 0 : i32
    return %c0_i32, %arg0, %c0_i32_0 : i32, i32, i32
  }
  func.func @transform_1(%arg0: i32) -> (i32, i32, i32) {
    %c0_i32 = arith.constant 0 : i32
    %c0_i32_0 = arith.constant 0 : i32
    %c0_i32_1 = arith.constant 0 : i32
    return %c0_i32, %arg0, %c0_i32_0 : i32, i32, i32
  }
}

</mosaic_0001>

<llo_original>
// kernel: tpu_custom_call.1
$region0: #{tpu_custom_call.1}
  #allocation0 [shape = 'u32[]', space=smem, size = 0x4, offset = 0x4, fixed_abs, tag = 'smem constant byte address 0x4 - core index']
  #allocation1 [shape = 'u32[144,128]{1,0:T(1,128)}', space=vmem, size = 0x12000, scoped, tag = 'internal scratch']
  %s0 = inlined_call_operand.hbm [shape: bf16[3,16,128], index: 0, kind: input, shape index: {}]
  %s1 = inlined_call_operand.hbm [shape: f32[3,16,128], index: 1, kind: output, shape index: {}]
  %s2 = sld [smem:[#allocation0]]
  $region18: #{tpu_custom_call.1} parent=0
    _
  %s4 = ssub.s32 1, %s2
  %s5 = scalar_select 0, %s4, %s2
  $region1: #{tpu_custom_call.1} parent=0
    #allocation2 [shape = 'u8[12288]{0}', space=vmem, size = 0x3000, scoped, tag = 'input window, operand 0, single buffered']
    #allocation3 [shape = 's32[1]{0}', space=sflag, size = 0x4, scoped, tag = 'scoped memory for tpu_custom_call.1']
    #allocation4 [shape = 's32[1]{0}', space=sflag, size = 0x4, scoped, tag = 'scoped memory for tpu_custom_call.1']
    #allocation5 [shape = 'u8[24576]{0}', space=vmem, size = 0x6000, scoped, tag = 'output window, operand 0, single buffered']
    %6 = vsyncpa [#allocation3], 0
    %7 = vsyncpa [#allocation4], 0
    // Predicated region
    $region2: #{tpu_custom_call.1} parent=1 // pred_check
      _
    $region3: #{tpu_custom_call.1} parent=1 // pred_check_branch
      %9 = sbr.rel (0) target = $region5
    $region4: #{tpu_custom_call.1} parent=1 // pred_region
      %s11 = ssub.s32 384, 384
      %12 = vsyncadd [#allocation3], %s11
      %s13 = sshll.u32 [#allocation2], 4
      %s14 = int_to_ptr.vmem [resolvable:$true] %s13
      %19 = dma.hbm_to_vmem [thread:$0]  %s0, 384, %s14, [#allocation3], 64, 64, 4
    $region5: #{tpu_custom_call.1} parent=1 // pred_fallthru
      _
    // Predicated region
    $region6: #{tpu_custom_call.1} parent=1 // pred_check
      _
    $region7: #{tpu_custom_call.1} parent=1 // pred_check_branch
      %21 = sbr.rel (0) target = $region9
    $region8: #{tpu_custom_call.1} parent=1 // pred_region
      %22 = dma.done [#allocation3], 384
    $region9: #{tpu_custom_call.1} parent=1 // pred_fallthru
      _
    %v23 = vld [vmem:[#allocation2] sm:$0xf]
    %v24 = vld [vmem:[#allocation2 + $0x4] sm:$0xf]
    %v25 = vld [vmem:[#allocation2 + $0x8] sm:$0xf]
    %v26 = vld [vmem:[#allocation2 + $0xc] sm:$0xf]
    %v27 = vld [vmem:[#allocation2 + $0x10] sm:$0xf]
    %v28 = vld [vmem:[#allocation2 + $0x14] sm:$0xf]
    %v29 = vunpack.c.l.bf16 %v23
    %v30 = vunpack.c.l.bf16 %v24
    %v31 = vunpack.c.l.bf16 %v25
    %v32 = vunpack.c.l.bf16 %v26
    %v33 = vunpack.c.l.bf16 %v27
    %v34 = vunpack.c.l.bf16 %v28
    %v35 = vmul.f32 %v29, %v29
    %v36 = vmul.f32 %v30, %v30
    %v37 = vmul.f32 %v31, %v31
    %v38 = vmul.f32 %v32, %v32
    %v39 = vadd.f32 %v35, %v37
    %v40 = vadd.f32 %v36, %v38
    %v41 = vmul.f32 %v33, %v33
    %v42 = vmul.f32 %v34, %v34
    %v43 = vadd.f32 %v39, %v41
    %v44 = vadd.f32 %v40, %v42
    %v45 = vrsqrt.pop %v43
    %v46 = vrsqrt.pop %v44
    %v47 = vmul.f32 %v29, %v45
    %v48 = vmul.f32 %v30, %v46
    %49 = vst [vmem:[#allocation5] sm:$0xff] %v47
    %50 = vst [vmem:[#allocation5 + $0x8] sm:$0xff] %v48
    %v51 = vmul.f32 %v31, %v45
    %v52 = vmul.f32 %v32, %v46
    %s53 = scalar_lea.vmem [#allocation5], 16
    %54 = vst [vmem:[%s53] sm:$0xff] %v51
    %55 = vst [vmem:[%s53 + $0x8] sm:$0xff] %v52
    %v56 = vmul.f32 %v33, %v45
    %v57 = vmul.f32 %v34, %v46
    %s58 = scalar_lea.vmem [#allocation5], 32
    %59 = vst [vmem:[%s58] sm:$0xff] %v56
    %60 = vst [vmem:[%s58 + $0x8] sm:$0xff] %v57
    // Predicated region
    $region10: #{tpu_custom_call.1} parent=1 // pred_check
      _
    $region11: #{tpu_custom_call.1} parent=1 // pred_check_branch
      %62 = sbr.rel (0) target = $region13
    $region12: #{tpu_custom_call.1} parent=1 // pred_region
      %s64 = ssub.s32 768, 768
      %65 = vsyncadd [#allocation4], %s64
      %s66 = sshll.u32 [#allocation5], 4
      %s67 = int_to_ptr.vmem [resolvable:$true] %s66
      %72 = dma.vmem_to_hbm [thread:$0]  %s67, 768, %s1, [#allocation4], 128, 128, 8
    $region13: #{tpu_custom_call.1} parent=1 // pred_fallthru
      _
    // Predicated region
    $region14: #{tpu_custom_call.1} parent=1 // pred_check
      _
    $region15: #{tpu_custom_call.1} parent=1 // pred_check_branch
      %74 = sbr.rel (0) target = $region17
    $region16: #{tpu_custom_call.1} parent=1 // pred_region
      %75 = dma.done [#allocation4], 768
    $region17: #{tpu_custom_call.1} parent=1 // pred_fallthru
      _
    %76 = vsyncpa [#allocation3], 1
    %77 = vsyncpa [#allocation4], 1

</llo_original>
